<compile_context>
chip_gen: v7x
topology: tpu7x:2x2x1
jax: 0.10.0
libtpu: 0.0.40
codegen_flags: <defaults>
</compile_context>

<pallas_src>
import functools

import jax
import jax.numpy as jnp
from jax.experimental import pallas as pl
from jax.experimental.pallas import tpu as pltpu

LANE = 128           # TPU lane width for f32
HIDDEN = 64          # module spec: two hidden layers of width 64
TILE_B = 1024        # max batch tile for the gridded (large-batch) path
SMALL_BATCH = 512    # <= this -> single gridless invocation

# Packed parameter slab layout (f32, 128 lanes wide):
#   rows [  0:128)  W1  (state_size rows used, HIDDEN cols used)
#   rows [128:256)  W2  (HIDDEN rows used,     HIDDEN cols used)
#   rows [256:384)  W3  (HIDDEN rows used,     action_size cols used)
#   rows [384:392)  bias block: row 0 = b1, row 1 = b2, row 2 = b3, rest zero
_W1_OFF, _W2_OFF, _W3_OFF, _BIAS_OFF = 0, 128, 256, 384
SLAB_ROWS = 392


def qnet_kernel(x_ref, p_ref, o_ref):
    """Fused 3-layer MLP: relu(x@W1+b1) -> relu(.@W2+b2) -> .@W3+b3.

    x_ref: (tile_b, state_size)  un-padded activations
    p_ref: (392, 128)            packed, zero-padded weight slab
    o_ref: (tile_b, action_size) narrow Q-value output
    """
    state_size = x_ref.shape[-1]
    action_size = o_ref.shape[-1]

    x = x_ref[...]                                      # (tile_b, state_size)
    w1 = p_ref[_W1_OFF:_W1_OFF + state_size, :]         # (state_size, 128)
    w2 = p_ref[_W2_OFF:_W2_OFF + LANE, :]               # (128, 128)
    w3 = p_ref[_W3_OFF:_W3_OFF + LANE, :]               # (128, 128)
    bias = p_ref[_BIAS_OFF:_BIAS_OFF + 8, :]            # (8, 128) aligned load
    b1 = bias[0:1, :]
    b2 = bias[1:2, :]
    b3 = bias[2:3, :]

    h = jnp.dot(x, w1, preferred_element_type=jnp.float32) + b1
    h = jnp.maximum(h, 0.0)
    h = jnp.dot(h, w2, preferred_element_type=jnp.float32) + b2
    h = jnp.maximum(h, 0.0)
    out = jnp.dot(h, w3, preferred_element_type=jnp.float32) + b3
    o_ref[...] = out[:, :action_size].astype(o_ref.dtype)


def pack_params(params):
    """Pack params into one lane-padded (392, 128) f32 slab (zero-padded).

    Zero padding is a correctness invariant: padded lanes/rows must stay zero
    so that padded hidden lanes carry exact zeros through the MLP.
    """
    w1, b1 = params["w1"], jnp.reshape(params["b1"], (-1,))
    w2, b2 = params["w2"], jnp.reshape(params["b2"], (-1,))
    w3, b3 = params["w3"], jnp.reshape(params["b3"], (-1,))
    state_size = w1.shape[0]
    action_size = w3.shape[1]
    assert state_size <= LANE and action_size <= LANE and w1.shape[1] == HIDDEN

    slab = jnp.zeros((SLAB_ROWS, LANE), jnp.float32)
    slab = slab.at[_W1_OFF:_W1_OFF + state_size, :HIDDEN].set(w1.astype(jnp.float32))
    slab = slab.at[_W2_OFF:_W2_OFF + HIDDEN, :HIDDEN].set(w2.astype(jnp.float32))
    slab = slab.at[_W3_OFF:_W3_OFF + HIDDEN, :action_size].set(w3.astype(jnp.float32))
    slab = slab.at[_BIAS_OFF + 0, :HIDDEN].set(b1.astype(jnp.float32))
    slab = slab.at[_BIAS_OFF + 1, :HIDDEN].set(b2.astype(jnp.float32))
    slab = slab.at[_BIAS_OFF + 2, :action_size].set(b3.astype(jnp.float32))
    return slab


def _round_up(n, m):
    return ((n + m - 1) // m) * m


@functools.partial(jax.jit, static_argnames=("action_size", "tile_b"))
def qnetwork_forward(state, packed, *, action_size, tile_b=TILE_B):
    """state: (B, state_size) f32; packed: (392,128) slab from pack_params."""
    B, state_size = state.shape
    x = state.astype(jnp.float32)

    if B <= SMALL_BATCH:
        # Small batch: single fused invocation, no grid, no pipeline overhead,
        # no padding in either dimension.
        return pl.pallas_call(
            qnet_kernel,
            out_shape=jax.ShapeDtypeStruct((B, action_size), jnp.float32),
            in_specs=[
                pl.BlockSpec(memory_space=pltpu.MemorySpace.VMEM),
                pl.BlockSpec(memory_space=pltpu.MemorySpace.VMEM),
            ],
            out_specs=pl.BlockSpec(memory_space=pltpu.MemorySpace.VMEM),
        )(x, packed)

    # Large batch: batch-tiled "parallel" grid. Cap the tile so there are
    # always >= 2 grid steps (v7x dual-TC sharding); the weight slab is
    # replicated via a constant index_map and stays VMEM-resident.
    tile = min(tile_b, _round_up((B + 1) // 2, 8))
    b_pad = _round_up(B, tile)
    if b_pad != B:
        x = jnp.pad(x, ((0, b_pad - B), (0, 0)))

    out = pl.pallas_call(
        qnet_kernel,
        out_shape=jax.ShapeDtypeStruct((b_pad, action_size), jnp.float32),
        grid=(b_pad // tile,),
        in_specs=[
            pl.BlockSpec((tile, state_size), lambda i: (i, 0)),
            pl.BlockSpec((SLAB_ROWS, LANE), lambda i: (0, 0)),
        ],
        out_specs=pl.BlockSpec((tile, action_size), lambda i: (i, 0)),
        compiler_params=pltpu.CompilerParams(
            dimension_semantics=("parallel",),
        ),
    )(x, packed)
    return out[:B]


def init_params(key, state_size, hidden, action_size):
    """PyTorch nn.Linear default init: U(-1/sqrt(fan_in), 1/sqrt(fan_in)).
    Weights stored transposed vs. torch, i.e. (in_features, out_features)."""
    ks = jax.random.split(key, 6)

    def linear(kw, kb, fan_in, fan_out):
        bound = 1.0 / jnp.sqrt(jnp.float32(fan_in))
        w = jax.random.uniform(kw, (fan_in, fan_out), jnp.float32, -bound, bound)
        b = jax.random.uniform(kb, (1, fan_out), jnp.float32, -bound, bound)
        return w, b

    w1, b1 = linear(ks[0], ks[1], state_size, hidden)
    w2, b2 = linear(ks[2], ks[3], hidden, hidden)
    w3, b3 = linear(ks[4], ks[5], hidden, action_size)
    return {"w1": w1, "b1": b1, "w2": w2, "b2": b2, "w3": w3, "b3": b3}


def qnetwork_reference(state, p):
    h1 = jnp.maximum(state @ p["w1"] + p["b1"], 0.0)
    h2 = jnp.maximum(h1 @ p["w2"] + p["b2"], 0.0)
    return h2 @ p["w3"] + p["b3"]


if __name__ == "__main__":
    key = jax.random.PRNGKey(0)
    k_state, k_params, k_big = jax.random.split(key, 3)

    batch, state_size, action_size = 8, 8, 4
    state = jax.random.normal(k_state, (batch, state_size), jnp.float32)
    params = init_params(k_params, state_size, HIDDEN, action_size)
    packed = pack_params(params)

    # Small-batch (gridless, whole-array-in-VMEM) path.
    out = jax.block_until_ready(
        qnetwork_forward(state, packed, action_size=action_size))
    ref = qnetwork_reference(state, params)
    assert out.shape == (batch, action_size)
    assert jnp.allclose(out, ref, atol=1e-4, rtol=1e-4), "small-batch mismatch"

    # Large-batch (batch-tiled, parallel-grid) path; non-multiple batch to
    # exercise the tail-padding logic.
    big_b = 1500
    big_state = jax.random.normal(k_big, (big_b, state_size), jnp.float32)
    out_big = jax.block_until_ready(
        qnetwork_forward(big_state, packed, action_size=action_size))
    ref_big = qnetwork_reference(big_state, params)
    assert out_big.shape == (big_b, action_size)
    assert jnp.allclose(out_big, ref_big, atol=1e-4, rtol=1e-4), "batched mismatch"

    print("KERNEL_OK")
</pallas_src>

<mosaic_0001>
module attributes {stable_mosaic.version = 11 : i64} {
  func.func @qnet_kernel(%arg0: memref<8x8xf32, #tpu.memory_space<vmem>>, %arg1: memref<392x128xf32, #tpu.memory_space<vmem>>, %arg2: memref<8x4xf32, #tpu.memory_space<vmem>>) attributes {dimension_semantics = [], scalar_prefetch = 0 : i64, scratch_operands = 0 : i64, tpu.core_type = #tpu.core_type<tc>} {
    %c0 = arith.constant 0 : index
    %c0_0 = arith.constant 0 : index
    %0 = vector.load %arg0[%c0, %c0_0] : memref<8x8xf32, #tpu.memory_space<vmem>>, vector<8x8xf32>
    %c0_1 = arith.constant 0 : index
    %c0_2 = arith.constant 0 : index
    %1 = vector.load %arg1[%c0_1, %c0_2] : memref<392x128xf32, #tpu.memory_space<vmem>>, vector<8x128xf32>
    %c128 = arith.constant 128 : index
    %c0_3 = arith.constant 0 : index
    %2 = vector.load %arg1[%c128, %c0_3] : memref<392x128xf32, #tpu.memory_space<vmem>>, vector<128x128xf32>
    %c256 = arith.constant 256 : index
    %c0_4 = arith.constant 0 : index
    %3 = vector.load %arg1[%c256, %c0_4] : memref<392x128xf32, #tpu.memory_space<vmem>>, vector<128x128xf32>
    %c384 = arith.constant 384 : index
    %c0_5 = arith.constant 0 : index
    %4 = vector.load %arg1[%c384, %c0_5] : memref<392x128xf32, #tpu.memory_space<vmem>>, vector<8x128xf32>
    %5 = vector.extract_strided_slice %4 {offsets = [0, 0], sizes = [1, 128], strides = [1, 1]} : vector<8x128xf32> to vector<1x128xf32>
    %6 = vector.extract_strided_slice %4 {offsets = [1, 0], sizes = [1, 128], strides = [1, 1]} : vector<8x128xf32> to vector<1x128xf32>
    %7 = vector.extract_strided_slice %4 {offsets = [2, 0], sizes = [1, 128], strides = [1, 1]} : vector<8x128xf32> to vector<1x128xf32>
    %cst = arith.constant dense<0.000000e+00> : vector<8x128xf32>
    %8 = tpu.matmul %0, %1, %cst {dimension_numbers = #tpu.dot_dimension_numbers<[1], [0], [0], [1], [0, 0, 1, 1], [], []>} : vector<8x8xf32>, vector<8x128xf32>, vector<8x128xf32> -> vector<8x128xf32>
    %9 = vector.broadcast %5 : vector<1x128xf32> to vector<8x128xf32>
    %10 = arith.addf %8, %9 : vector<8x128xf32>
    %cst_6 = arith.constant 0.000000e+00 : f32
    %11 = vector.broadcast %cst_6 : f32 to vector<8x128xf32>
    %12 = arith.maximumf %10, %11 : vector<8x128xf32>
    %cst_7 = arith.constant dense<0.000000e+00> : vector<8x128xf32>
    %13 = tpu.matmul %12, %2, %cst_7 {dimension_numbers = #tpu.dot_dimension_numbers<[1], [0], [0], [1], [0, 0, 1, 1], [], []>} : vector<8x128xf32>, vector<128x128xf32>, vector<8x128xf32> -> vector<8x128xf32>
    %14 = vector.broadcast %6 : vector<1x128xf32> to vector<8x128xf32>
    %15 = arith.addf %13, %14 : vector<8x128xf32>
    %cst_8 = arith.constant 0.000000e+00 : f32
    %16 = vector.broadcast %cst_8 : f32 to vector<8x128xf32>
    %17 = arith.maximumf %15, %16 : vector<8x128xf32>
    %cst_9 = arith.constant dense<0.000000e+00> : vector<8x128xf32>
    %18 = tpu.matmul %17, %3, %cst_9 {dimension_numbers = #tpu.dot_dimension_numbers<[1], [0], [0], [1], [0, 0, 1, 1], [], []>} : vector<8x128xf32>, vector<128x128xf32>, vector<8x128xf32> -> vector<8x128xf32>
    %19 = vector.broadcast %7 : vector<1x128xf32> to vector<8x128xf32>
    %20 = arith.addf %18, %19 : vector<8x128xf32>
    %21 = vector.extract_strided_slice %20 {offsets = [0, 0], sizes = [8, 4], strides = [1, 1]} : vector<8x128xf32> to vector<8x4xf32>
    %c0_10 = arith.constant 0 : index
    %c0_11 = arith.constant 0 : index
    %22 = vector.load %arg2[%c0_10, %c0_11] : memref<8x4xf32, #tpu.memory_space<vmem>>, vector<8x4xf32>
    tpu.vector_store %arg2[%c0_10, %c0_11], %21 {strides = array<i32>} : memref<8x4xf32, #tpu.memory_space<vmem>>, vector<8x4xf32>,
    return
  }
}

</mosaic_0001>

<llo_original>
// kernel: qnetwork_forward.1
$region0: #{qnetwork_forward.1}
  #allocation0 [shape = 'u32[]', space=smem, size = 0x4, offset = 0x4, fixed_abs, tag = 'smem constant byte address 0x4 - core index']
  #allocation1 [shape = 'u32[144,128]{1,0:T(1,128)}', space=vmem, size = 0x12000, scoped, tag = 'internal scratch']
  %s0 = inlined_call_operand.hbm [shape: f32[8,8], index: 0, kind: input, shape index: {}]
  %s1 = inlined_call_operand.hbm [shape: f32[392,128], index: 1, kind: input, shape index: {}]
  %s2 = inlined_call_operand.vmem [shape: f32[8,4], index: 2, kind: output, shape index: {}]
  %s3 = sld [smem:[#allocation0]]
  $region26: #{qnetwork_forward.1} parent=0
    _
  %s5 = ssub.s32 1, %s3
  %s6 = scalar_select 0, %s5, %s3
  $region1: #{qnetwork_forward.1} parent=0
    #allocation2 [shape = 'u8[4096]{0}', space=vmem, size = 0x1000, scoped, tag = 'input window, operand 0, single buffered']
    #allocation3 [shape = 's32[1]{0}', space=sflag, size = 0x4, scoped, tag = 'scoped memory for qnetwork_forward.1']
    #allocation4 [shape = 'u8[200704]{0}', space=vmem, size = 0x31000, scoped, tag = 'input window, operand 1, single buffered']
    #allocation5 [shape = 's32[1]{0}', space=sflag, size = 0x4, scoped, tag = 'scoped memory for qnetwork_forward.1']
    %7 = vsyncpa [#allocation3], 0
    %8 = vsyncpa [#allocation5], 0
    // Predicated region
    $region2: #{qnetwork_forward.1} parent=1 // pred_check
      _
    $region3: #{qnetwork_forward.1} parent=1 // pred_check_branch
      %10 = sbr.rel (0) target = $region5
    $region4: #{qnetwork_forward.1} parent=1 // pred_region
      %s12 = ssub.s32 128, 128
      %13 = vsyncadd [#allocation3], %s12
      %s15 = sshll.u32 [#allocation2], 4
      %s16 = int_to_ptr.vmem [resolvable:$true] %s15
      %18 = dma.hbm_to_vmem [thread:$0]  %s0, 128, %s16, [#allocation3]
    $region5: #{qnetwork_forward.1} parent=1 // pred_fallthru
      _
    // Predicated region
    $region6: #{qnetwork_forward.1} parent=1 // pred_check
      _
    $region7: #{qnetwork_forward.1} parent=1 // pred_check_branch
      %20 = sbr.rel (0) target = $region9
    $region8: #{qnetwork_forward.1} parent=1 // pred_region
      %s22 = ssub.s32 6272, 6272
      %23 = vsyncadd [#allocation5], %s22
      %s24 = sshll.u32 [#allocation4], 4
      %s25 = int_to_ptr.vmem [resolvable:$true] %s24
      %30 = dma.hbm_to_vmem [thread:$0]  %s1, 6272, %s25, [#allocation5], 128, 128, 8
    $region9: #{qnetwork_forward.1} parent=1 // pred_fallthru
      _
    // Predicated region
    $region10: #{qnetwork_forward.1} parent=1 // pred_check
      _
    $region11: #{qnetwork_forward.1} parent=1 // pred_check_branch
      %32 = sbr.rel (0) target = $region13
    $region12: #{qnetwork_forward.1} parent=1 // pred_region
      %33 = dma.done [#allocation3], 128
    $region13: #{qnetwork_forward.1} parent=1 // pred_fallthru
      _
    // Predicated region
    $region14: #{qnetwork_forward.1} parent=1 // pred_check
      _
    $region15: #{qnetwork_forward.1} parent=1 // pred_check_branch
      %35 = sbr.rel (0) target = $region17
    $region16: #{qnetwork_forward.1} parent=1 // pred_region
      %36 = dma.done [#allocation5], 6272
    $region17: #{qnetwork_forward.1} parent=1 // pred_fallthru
      _
    %v37 = vld [vmem:[#allocation2] sm:$0xff]
    %v38 = vld [vmem:[#allocation4] sm:$0xff]
    %v39 = vld [vmem:[#allocation4 + $0x80] sm:$0xff]
    %v40 = vld [vmem:[#allocation4 + $0x88] sm:$0xff]
    %v41 = vld [vmem:[#allocation4 + $0x90] sm:$0xff]
    %v42 = vld [vmem:[#allocation4 + $0x98] sm:$0xff]
    %v43 = vld [vmem:[#allocation4 + $0xa0] sm:$0xff]
    %v44 = vld [vmem:[#allocation4 + $0xa8] sm:$0xff]
    %v45 = vld [vmem:[#allocation4 + $0xb0] sm:$0xff]
    %v46 = vld [vmem:[#allocation4 + $0xb8] sm:$0xff]
    %v47 = vld [vmem:[#allocation4 + $0xc0] sm:$0xff]
    %v48 = vld [vmem:[#allocation4 + $0xc8] sm:$0xff]
    %v49 = vld [vmem:[#allocation4 + $0xd0] sm:$0xff]
    %v50 = vld [vmem:[#allocation4 + $0xd8] sm:$0xff]
    %v51 = vld [vmem:[#allocation4 + $0xe0] sm:$0xff]
    %v52 = vld [vmem:[#allocation4 + $0xe8] sm:$0xff]
    %v53 = vld [vmem:[#allocation4 + $0xf0] sm:$0xff]
    %v54 = vld [vmem:[#allocation4 + $0xf8] sm:$0xff]
    %v55 = vld [vmem:[#allocation4 + $0x100] sm:$0xff]
    %v56 = vld [vmem:[#allocation4 + $0x108] sm:$0xff]
    %v57 = vld [vmem:[#allocation4 + $0x110] sm:$0xff]
    %v58 = vld [vmem:[#allocation4 + $0x118] sm:$0xff]
    %v59 = vld [vmem:[#allocation4 + $0x120] sm:$0xff]
    %v60 = vld [vmem:[#allocation4 + $0x128] sm:$0xff]
    %v61 = vld [vmem:[#allocation4 + $0x130] sm:$0xff]
    %v62 = vld [vmem:[#allocation4 + $0x138] sm:$0xff]
    %v63 = vld [vmem:[#allocation4 + $0x140] sm:$0xff]
    %v64 = vld [vmem:[#allocation4 + $0x148] sm:$0xff]
    %v65 = vld [vmem:[#allocation4 + $0x150] sm:$0xff]
    %v66 = vld [vmem:[#allocation4 + $0x158] sm:$0xff]
    %v67 = vld [vmem:[#allocation4 + $0x160] sm:$0xff]
    %v68 = vld [vmem:[#allocation4 + $0x168] sm:$0xff]
    %v69 = vld [vmem:[#allocation4 + $0x170] sm:$0xff]
    %v70 = vld [vmem:[#allocation4 + $0x178] sm:$0xff]
    %v71 = vld [vmem:[#allocation4 + $0x180] sm:$0xff]
    %v72 = vlaneseq
    %v73 = vshrl.u32 %v72, 7
    %v74 = vsub.s32 0, %v73
    %v75 = vrot.slane %v71, %v74
    %vm76 = vcmask 64512
    %v78 = vsel %vm76, %v37, 0
    %80 = vmatprep.subr.mxu0 0.0
    %81 = vmatpush1.msra.mxu0 %v38
    %82 = vmatprep.subr.mxu0 0.0
    %83 = vmatpush1.msra.mxu0 0.0
    %84 = vmatprep.subr.mxu0 0.0
    %85 = vmatpush1.msra.mxu0 0.0
    %86 = vmatprep.subr.mxu0 0.0
    %87 = vmatpush1.msra.mxu0 0.0
    %88 = vmatprep.subr.mxu0 0.0
    %89 = vmatpush1.msra.mxu0 0.0
    %90 = vmatprep.subr.mxu0 0.0
    %91 = vmatpush1.msra.mxu0 0.0
    %92 = vmatprep.subr.mxu0 0.0
    %93 = vmatpush1.msra.mxu0 0.0
    %94 = vmatprep.subr.mxu0 0.0
    %95 = vmatpush1.msra.mxu0 0.0
    %96 = vmatprep.subr.mxu0 0.0
    %97 = vmatpush1.msra.mxu0 0.0
    %98 = vmatprep.subr.mxu0 0.0
    %99 = vmatpush1.msra.mxu0 0.0
    %100 = vmatprep.subr.mxu0 0.0
    %101 = vmatpush1.msra.mxu0 0.0
    %102 = vmatprep.subr.mxu0 0.0
    %103 = vmatpush1.msra.mxu0 0.0
    %104 = vmatprep.subr.mxu0 0.0
    %105 = vmatpush1.msra.mxu0 0.0
    %106 = vmatprep.subr.mxu0 0.0
    %107 = vmatpush1.msra.mxu0 0.0
    %108 = vmatprep.subr.mxu0 0.0
    %109 = vmatpush1.msra.mxu0 0.0
    %110 = vmatprep.subr.mxu0 0.0
    %111 = vmatpush1.msra.mxu0 0.0
    %112 = vmatprep.subr.mxu0 0.0
    %113 = vmatpush1.msra.mxu0 0.0
    %114 = vmatprep.subr.mxu0 0.0
    %115 = vmatpush1.msra.mxu0 0.0
    %116 = vmatprep.subr.mxu0 0.0
    %117 = vmatpush1.msra.mxu0 0.0
    %118 = vmatprep.subr.mxu0 0.0
    %119 = vmatpush1.msra.mxu0 0.0
    %120 = vmatprep.subr.mxu0 0.0
    %121 = vmatpush1.msra.mxu0 0.0
    %122 = vmatprep.subr.mxu0 0.0
    %123 = vmatpush1.msra.mxu0 0.0
    %124 = vmatprep.subr.mxu0 0.0
    %125 = vmatpush1.msra.mxu0 0.0
    %126 = vmatprep.subr.mxu0 0.0
    %127 = vmatpush1.msra.mxu0 0.0
    %128 = vmatprep.subr.mxu0 0.0
    %129 = vmatpush1.msra.mxu0 0.0
    %130 = vmatprep.subr.mxu0 0.0
    %131 = vmatpush1.msra.mxu0 0.0
    %132 = vmatprep.subr.mxu0 0.0
    %133 = vmatpush1.msra.mxu0 0.0
    %134 = vmatprep.subr.mxu0 0.0
    %135 = vmatpush1.msra.mxu0 0.0
    %136 = vmatprep.subr.mxu0 0.0
    %137 = vmatpush1.msra.mxu0 0.0
    %138 = vmatprep.subr.mxu0 0.0
    %139 = vmatpush1.msra.mxu0 0.0
    %140 = vmatprep.subr.mxu0 0.0
    %141 = vmatpush1.msra.mxu0 0.0
    %142 = vmatprep.subr.mxu0 0.0
    %143 = vmatpush1.msra.mxu0 0.0
    %144 = vmatprep.mubr.f32.mxu0 0.0
    %145 = vmatmul.mubr.f32.gmra.mrb[0].mxu0 %v78
    %v146 = vpop.f32.mrb[0].mxu0
    %v147 = vadd.f32 %v75, %v146
    %v148 = vpop.f32.mrb[0].mxu0
    %149 = vdwg.mxu0
    %v150 = vmax.f32 %v147, 0.0
    %v151 = vlaneseq
    %v152 = vshrl.u32 %v151, 7
    %v153 = vsub.s32 1, %v152
    %v154 = vrot.slane %v71, %v153
    %155 = vmatprep.subr.mxu0 0.0
    %156 = vmatpush1.msra.mxu0 %v39
    %157 = vmatprep.subr.mxu0 0.0
    %158 = vmatpush1.msra.mxu0 %v40
    %159 = vmatprep.subr.mxu0 0.0
    %160 = vmatpush1.msra.mxu0 %v41
    %161 = vmatprep.subr.mxu0 0.0
    %162 = vmatpush1.msra.mxu0 %v42
    %163 = vmatprep.subr.mxu0 0.0
    %164 = vmatpush1.msra.mxu0 %v43
    %165 = vmatprep.subr.mxu0 0.0
    %166 = vmatpush1.msra.mxu0 %v44
    %167 = vmatprep.subr.mxu0 0.0
    %168 = vmatpush1.msra.mxu0 %v45
    %169 = vmatprep.subr.mxu0 0.0
    %170 = vmatpush1.msra.mxu0 %v46
    %171 = vmatprep.subr.mxu0 0.0
    %172 = vmatpush1.msra.mxu0 %v47
    %173 = vmatprep.subr.mxu0 0.0
    %174 = vmatpush1.msra.mxu0 %v48
    %175 = vmatprep.subr.mxu0 0.0
    %176 = vmatpush1.msra.mxu0 %v49
    %177 = vmatprep.subr.mxu0 0.0
    %178 = vmatpush1.msra.mxu0 %v50
    %179 = vmatprep.subr.mxu0 0.0
    %180 = vmatpush1.msra.mxu0 %v51
    %181 = vmatprep.subr.mxu0 0.0
    %182 = vmatpush1.msra.mxu0 %v52
    %183 = vmatprep.subr.mxu0 0.0
    %184 = vmatpush1.msra.mxu0 %v53
    %185 = vmatprep.subr.mxu0 0.0
    %186 = vmatpush1.msra.mxu0 %v54
    %187 = vmatprep.subr.mxu0 0.0
    %188 = vmatpush1.msra.mxu0 0.0
    %189 = vmatprep.subr.mxu0 0.0
    %190 = vmatpush1.msra.mxu0 0.0
    %191 = vmatprep.subr.mxu0 0.0
    %192 = vmatpush1.msra.mxu0 0.0
    %193 = vmatprep.subr.mxu0 0.0
    %194 = vmatpush1.msra.mxu0 0.0
    %195 = vmatprep.subr.mxu0 0.0
    %196 = vmatpush1.msra.mxu0 0.0
    %197 = vmatprep.subr.mxu0 0.0
    %198 = vmatpush1.msra.mxu0 0.0
    %199 = vmatprep.subr.mxu0 0.0
    %200 = vmatpush1.msra.mxu0 0.0
    %201 = vmatprep.subr.mxu0 0.0
    %202 = vmatpush1.msra.mxu0 0.0
    %203 = vmatprep.subr.mxu0 0.0
    %204 = vmatpush1.msra.mxu0 0.0
    %205 = vmatprep.subr.mxu0 0.0
    %206 = vmatpush1.msra.mxu0 0.0
    %207 = vmatprep.subr.mxu0 0.0
    %208 = vmatpush1.msra.mxu0 0.0
    %209 = vmatprep.subr.mxu0 0.0
    %210 = vmatpush1.msra.mxu0 0.0
    %211 = vmatprep.subr.mxu0 0.0
    %212 = vmatpush1.msra.mxu0 0.0
    %213 = vmatprep.subr.mxu0 0.0
    %214 = vmatpush1.msra.mxu0 0.0
    %215 = vmatprep.subr.mxu0 0.0
    %216 = vmatpush1.msra.mxu0 0.0
    %217 = vmatprep.subr.mxu0 0.0
    %218 = vmatpush1.msra.mxu0 0.0
    %219 = vmatprep.mubr.f32.mxu0 0.0
    %220 = vmatmul.mubr.f32.gmra.mrb[0].mxu0 %v150
    %v221 = vpop.f32.mrb[0].mxu0
    %v222 = vadd.f32 %v154, %v221
    %v223 = vpop.f32.mrb[0].mxu0
    %224 = vdwg.mxu0
    %v225 = vmax.f32 %v222, 0.0
    %v226 = vlaneseq
    %v227 = vshrl.u32 %v226, 7
    %v228 = vsub.s32 2, %v227
    %v229 = vrot.slane %v71, %v228
    %230 = vmatprep.subr.mxu0 0.0
    %231 = vmatpush1.msra.mxu0 %v55
    %232 = vmatprep.subr.mxu0 0.0
    %233 = vmatpush1.msra.mxu0 %v56
    %234 = vmatprep.subr.mxu0 0.0
    %235 = vmatpush1.msra.mxu0 %v57
    %236 = vmatprep.subr.mxu0 0.0
    %237 = vmatpush1.msra.mxu0 %v58
    %238 = vmatprep.subr.mxu0 0.0
    %239 = vmatpush1.msra.mxu0 %v59
    %240 = vmatprep.subr.mxu0 0.0
    %241 = vmatpush1.msra.mxu0 %v60
    %242 = vmatprep.subr.mxu0 0.0
    %243 = vmatpush1.msra.mxu0 %v61
    %244 = vmatprep.subr.mxu0 0.0
    %245 = vmatpush1.msra.mxu0 %v62
    %246 = vmatprep.subr.mxu0 0.0
    %247 = vmatpush1.msra.mxu0 %v63
    %248 = vmatprep.subr.mxu0 0.0
    %249 = vmatpush1.msra.mxu0 %v64
    %250 = vmatprep.subr.mxu0 0.0
    %251 = vmatpush1.msra.mxu0 %v65
    %252 = vmatprep.subr.mxu0 0.0
    %253 = vmatpush1.msra.mxu0 %v66
    %254 = vmatprep.subr.mxu0 0.0
    %255 = vmatpush1.msra.mxu0 %v67
    %256 = vmatprep.subr.mxu0 0.0
    %257 = vmatpush1.msra.mxu0 %v68
    %258 = vmatprep.subr.mxu0 0.0
    %259 = vmatpush1.msra.mxu0 %v69
    %260 = vmatprep.subr.mxu0 0.0
    %261 = vmatpush1.msra.mxu0 %v70
    %262 = vmatprep.subr.mxu0 0.0
    %263 = vmatpush1.msra.mxu0 0.0
    %264 = vmatprep.subr.mxu0 0.0
    %265 = vmatpush1.msra.mxu0 0.0
    %266 = vmatprep.subr.mxu0 0.0
    %267 = vmatpush1.msra.mxu0 0.0
    %268 = vmatprep.subr.mxu0 0.0
    %269 = vmatpush1.msra.mxu0 0.0
    %270 = vmatprep.subr.mxu0 0.0
    %271 = vmatpush1.msra.mxu0 0.0
    %272 = vmatprep.subr.mxu0 0.0
    %273 = vmatpush1.msra.mxu0 0.0
    %274 = vmatprep.subr.mxu0 0.0
    %275 = vmatpush1.msra.mxu0 0.0
    %276 = vmatprep.subr.mxu0 0.0
    %277 = vmatpush1.msra.mxu0 0.0
    %278 = vmatprep.subr.mxu0 0.0
    %279 = vmatpush1.msra.mxu0 0.0
    %280 = vmatprep.subr.mxu0 0.0
    %281 = vmatpush1.msra.mxu0 0.0
    %282 = vmatprep.subr.mxu0 0.0
    %283 = vmatpush1.msra.mxu0 0.0
    %284 = vmatprep.subr.mxu0 0.0
    %285 = vmatpush1.msra.mxu0 0.0
    %286 = vmatprep.subr.mxu0 0.0
    %287 = vmatpush1.msra.mxu0 0.0
    %288 = vmatprep.subr.mxu0 0.0
    %289 = vmatpush1.msra.mxu0 0.0
    %290 = vmatprep.subr.mxu0 0.0
    %291 = vmatpush1.msra.mxu0 0.0
    %292 = vmatprep.subr.mxu0 0.0
    %293 = vmatpush1.msra.mxu0 0.0
    %294 = vmatprep.mubr.f32.mxu0 0.0
    %295 = vmatmul.mubr.f32.gmra.mrb[0].mxu0 %v225
    %v296 = vpop.f32.mrb[0].mxu0
    %v297 = vadd.f32 %v229, %v296
    %v298 = vpop.f32.mrb[0].mxu0
    %299 = vdwg.mxu0
    %vm300 = vcmask 31744
    %301 = vst.msk [vmem:[%s2] sm:$0xff] %vm300, %v297
    // Predicated region
    $region18: #{qnetwork_forward.1} parent=1 // pred_check
      _
    $region19: #{qnetwork_forward.1} parent=1 // pred_check_branch
      %303 = sbr.rel (0) target = $region21
    $region20: #{qnetwork_forward.1} parent=1 // pred_region
      _
    $region21: #{qnetwork_forward.1} parent=1 // pred_fallthru
      _
    // Predicated region
    $region22: #{qnetwork_forward.1} parent=1 // pred_check
      _
    $region23: #{qnetwork_forward.1} parent=1 // pred_check_branch
      %305 = sbr.rel (0) target = $region25
    $region24: #{qnetwork_forward.1} parent=1 // pred_region
      _
    $region25: #{qnetwork_forward.1} parent=1 // pred_fallthru
      _
    %306 = vsyncpa [#allocation3], 1
    %307 = vsyncpa [#allocation5], 1

</llo_original>
